<compile_context>
chip_gen: v5e
topology: v5e:2x2
jax: 0.10.0
libtpu: 0.0.40
codegen_flags: <defaults>
</compile_context>

<pallas_src>
import jax
import jax.numpy as jnp
from jax.experimental import pallas as pl
from jax.experimental.pallas import tpu as pltpu


def mine_kernel(x_ref, w1_ref, w2_ref, bw_ref, b3_ref, out_ref):
    """Single-invocation kernel: one MLP pass over the stacked (2B, in) batch
    (joint rows first, marginal rows second), then the scalar reductions.

    bw_ref rows: 0 -> b1, 1 -> b2, 2 -> w3 (head weights as a row)."""
    bw = bw_ref[...]
    b1 = bw[0:1, :]
    b2 = bw[1:2, :]
    w3 = bw[2:3, :]

    # Layer 1: one MXU push over the stacked batch.
    h = jnp.dot(x_ref[...], w1_ref[...], preferred_element_type=jnp.float32) + b1
    h = jnp.maximum(h, 0.0)

    # Layer 2.
    h = jnp.dot(h, w2_ref[...], preferred_element_type=jnp.float32) + b2
    h = jnp.maximum(h, 0.0)

    # Layer 3 (hidden -> 1): VPU multiply + XLU lane-reduce instead of an N=1
    # MXU matmul (avoids a wasted MXU push/drain for a single output column).
    t = jnp.sum(h * w3, axis=-1, keepdims=True) + b3_ref[0]          # (2B, 1)

    b = x_ref.shape[0] // 2
    inv_n = 1.0 / jnp.float32(b)
    t_joint = t[:b, :]
    t_pom = t[b:, :]

    # T_joint.mean()
    out_ref[0] = jnp.sum(t_joint) * inv_n

    # Numerically-stable logsumexp; the shifted-exp pass is shared with the
    # exp-mean used for the EMA state (single full-batch EUP pass, no overflow).
    m = jnp.max(t_pom)
    s = jnp.sum(jnp.exp(t_pom - m))
    lme = m + jnp.log(s * inv_n)     # logsumexp(T_pom) - log(n)
    out_ref[1] = lme
    out_ref[2] = jnp.exp(lme)        # == T_pom.exp().mean(), overflow-safe


def make_params(key, hs_size, belief_size, hidden_size):
    """Deterministic parameter init (synthetic weights, torch-Linear-like scale).
    Weights are stored as (in, out)."""
    input_size = hs_size + belief_size
    ks = jax.random.split(key, 6)

    def lin(kw, kb, fan_in, fan_out):
        bound = 1.0 / jnp.sqrt(jnp.float32(fan_in))
        w = jax.random.uniform(kw, (fan_in, fan_out), jnp.float32, -bound, bound)
        b = jax.random.uniform(kb, (1, fan_out), jnp.float32, -bound, bound)
        return w, b

    w1, b1 = lin(ks[0], ks[1], input_size, hidden_size)
    w2, b2 = lin(ks[2], ks[3], hidden_size, hidden_size)
    w3, b3 = lin(ks[4], ks[5], hidden_size, 1)
    return (w1, b1, w2, b2, w3, b3)


def mine_forward(hiddens, beliefs, hiddens_marginal, beliefs_marginal, params,
                 ema_state=None, alpha=0.01, use_ema=True):
    """Pallas-backed forward of MutualInformationNeuralEstimator
    (representation_sizes=(None,) -> identity belief encoder).

    Returns (T_joint_mean, logmeanexp_T_pom, new_ema_state)."""
    w1, b1, w2, b2, w3, b3 = params

    # representation_size=None -> identity encoder on each belief part.
    # TODO(synk): DeepSet encoder branch (representation_size != None) not implemented.
    bel = beliefs[0] if len(beliefs) == 1 else jnp.concatenate(list(beliefs), axis=1)
    bel_m = (beliefs_marginal[0] if len(beliefs_marginal) == 1
             else jnp.concatenate(list(beliefs_marginal), axis=1))

    # Feature concat (lane axis) + joint/marginal stack (batch axis) done once
    # in the wrapper -> one (2B, hs+bs) operand, one layer-1 MXU matmul.
    joint = jnp.concatenate([hiddens, bel], axis=1)
    pom = jnp.concatenate([hiddens_marginal, bel_m], axis=1)
    x = jnp.concatenate([joint, pom], axis=0).astype(jnp.float32)    # (2B, in)

    # Pack b1, b2 and the head row w3 into one (3, hidden) VMEM operand.
    bias_w3 = jnp.concatenate(
        [jnp.reshape(b1, (1, -1)), jnp.reshape(b2, (1, -1)),
         jnp.reshape(w3, (1, -1))], axis=0).astype(jnp.float32)
    b3_s = jnp.reshape(b3, (-1,)).astype(jnp.float32)                # (1,) SMEM scalar

    # Single grid point, whole-array VMEM blocks; the three scalar results come
    # back in one SMEM f32[3] output (no masked (1,1) partial stores, one DMA).
    out = pl.pallas_call(
        mine_kernel,
        out_shape=jax.ShapeDtypeStruct((3,), jnp.float32),
        in_specs=[pl.BlockSpec(memory_space=pltpu.VMEM)] * 4
                 + [pl.BlockSpec(memory_space=pltpu.SMEM)],
        out_specs=pl.BlockSpec(memory_space=pltpu.SMEM),
    )(x, w1.astype(jnp.float32), w2.astype(jnp.float32), bias_w3, b3_s)

    t_joint_mean = out[0]
    logmeanexp = out[1]
    t_pom_exp = out[2]

    # EMA of exp(T_pom).mean(): stateful side-effect in the PyTorch module; it
    # only changes the backward pass (detached grad denominator), never the
    # forward return values.  Kept as explicit host-side state.
    if ema_state is None:
        new_ema = t_pom_exp
    else:
        new_ema = alpha * t_pom_exp + (1.0 - alpha) * ema_state
    # TODO(synk): LogMeanExpWithGradDenom custom-VJP (EMA grad denominator) is a
    # training-time autograd detail, not part of the forward pass.

    return t_joint_mean, logmeanexp, new_ema


def reference_forward(hiddens, beliefs, hiddens_marginal, beliefs_marginal, params):
    """Pure-JAX reference for correctness checking (mirrors the torch module)."""
    joint = jnp.concatenate([hiddens] + list(beliefs), axis=1)
    pom = jnp.concatenate([hiddens_marginal] + list(beliefs_marginal), axis=1)
    w1, b1, w2, b2, w3, b3 = params

    def mlp(x):
        h = jnp.maximum(x @ w1 + b1, 0.0)
        h = jnp.maximum(h @ w2 + b2, 0.0)
        return h @ w3 + b3

    t_joint = mlp(joint)
    t_pom = mlp(pom)
    n = jnp.float32(t_pom.shape[0])
    return (jnp.mean(t_joint),
            jax.scipy.special.logsumexp(t_pom) - jnp.log(n),
            jnp.mean(jnp.exp(t_pom)))


if __name__ == "__main__":
    B = 8            # batch of samples
    HS = 4           # hidden-state dim (hs_sizes)
    BS = 4           # belief dim (belief_sizes[0]), representation_size=None
    HIDDEN = 32      # hidden_size
    # num_layers = 2 -> Linear(HS+BS, 32), ReLU, Linear(32, 32), ReLU, Linear(32, 1)

    key = jax.random.PRNGKey(0)
    k_param, k_h, k_b, k_hm, k_bm = jax.random.split(key, 5)

    params = make_params(k_param, HS, BS, HIDDEN)

    hiddens = jax.random.normal(k_h, (B, HS), jnp.float32)
    beliefs = (jax.random.normal(k_b, (B, BS), jnp.float32),)
    hiddens_marginal = jax.random.normal(k_hm, (B, HS), jnp.float32)
    beliefs_marginal = (jax.random.normal(k_bm, (B, BS), jnp.float32),)

    t_joint, lme, ema = mine_forward(hiddens, beliefs,
                                     hiddens_marginal, beliefs_marginal,
                                     params, ema_state=None, alpha=0.01,
                                     use_ema=True)
    jax.block_until_ready((t_joint, lme, ema))

    # Verify against a pure-JAX reference.
    ref_t_joint, ref_lme, ref_exp_mean = reference_forward(
        hiddens, beliefs, hiddens_marginal, beliefs_marginal, params)
    assert jnp.allclose(t_joint, ref_t_joint, atol=1e-5, rtol=1e-5)
    assert jnp.allclose(lme, ref_lme, atol=1e-5, rtol=1e-5)
    assert jnp.allclose(ema, ref_exp_mean, atol=1e-5, rtol=1e-5)

    print("KERNEL_OK")
</pallas_src>

<mosaic_0001>
module attributes {stable_mosaic.version = 11 : i64} {
  func.func @mine_kernel(%arg0: memref<16x8xf32, #tpu.memory_space<vmem>>, %arg1: memref<8x32xf32, #tpu.memory_space<vmem>>, %arg2: memref<32x32xf32, #tpu.memory_space<vmem>>, %arg3: memref<3x32xf32, #tpu.memory_space<vmem>>, %arg4: memref<1xf32, #tpu.memory_space<smem>>, %arg5: memref<3xf32, #tpu.memory_space<smem>>) attributes {dimension_semantics = [], scalar_prefetch = 0 : i64, scratch_operands = 0 : i64, tpu.core_type = #tpu.core_type<tc>} {
    %c0 = arith.constant 0 : index
    %c0_0 = arith.constant 0 : index
    %0 = vector.load %arg3[%c0, %c0_0] : memref<3x32xf32, #tpu.memory_space<vmem>>, vector<3x32xf32>
    %1 = vector.extract_strided_slice %0 {offsets = [0, 0], sizes = [1, 32], strides = [1, 1]} : vector<3x32xf32> to vector<1x32xf32>
    %2 = vector.extract_strided_slice %0 {offsets = [1, 0], sizes = [1, 32], strides = [1, 1]} : vector<3x32xf32> to vector<1x32xf32>
    %3 = vector.extract_strided_slice %0 {offsets = [2, 0], sizes = [1, 32], strides = [1, 1]} : vector<3x32xf32> to vector<1x32xf32>
    %c0_1 = arith.constant 0 : index
    %c0_2 = arith.constant 0 : index
    %4 = vector.load %arg0[%c0_1, %c0_2] : memref<16x8xf32, #tpu.memory_space<vmem>>, vector<16x8xf32>
    %c0_3 = arith.constant 0 : index
    %c0_4 = arith.constant 0 : index
    %5 = vector.load %arg1[%c0_3, %c0_4] : memref<8x32xf32, #tpu.memory_space<vmem>>, vector<8x32xf32>
    %cst = arith.constant dense<0.000000e+00> : vector<16x32xf32>
    %6 = tpu.matmul %4, %5, %cst {dimension_numbers = #tpu.dot_dimension_numbers<[1], [0], [0], [1], [0, 0, 1, 1], [], []>} : vector<16x8xf32>, vector<8x32xf32>, vector<16x32xf32> -> vector<16x32xf32>
    %7 = vector.broadcast %1 : vector<1x32xf32> to vector<16x32xf32>
    %8 = arith.addf %6, %7 : vector<16x32xf32>
    %cst_5 = arith.constant 0.000000e+00 : f32
    %9 = vector.broadcast %cst_5 : f32 to vector<16x32xf32>
    %10 = arith.maximumf %8, %9 : vector<16x32xf32>
    %c0_6 = arith.constant 0 : index
    %c0_7 = arith.constant 0 : index
    %11 = vector.load %arg2[%c0_6, %c0_7] : memref<32x32xf32, #tpu.memory_space<vmem>>, vector<32x32xf32>
    %cst_8 = arith.constant dense<0.000000e+00> : vector<16x32xf32>
    %12 = tpu.matmul %10, %11, %cst_8 {dimension_numbers = #tpu.dot_dimension_numbers<[1], [0], [0], [1], [0, 0, 1, 1], [], []>} : vector<16x32xf32>, vector<32x32xf32>, vector<16x32xf32> -> vector<16x32xf32>
    %13 = vector.broadcast %2 : vector<1x32xf32> to vector<16x32xf32>
    %14 = arith.addf %12, %13 : vector<16x32xf32>
    %cst_9 = arith.constant 0.000000e+00 : f32
    %15 = vector.broadcast %cst_9 : f32 to vector<16x32xf32>
    %16 = arith.maximumf %14, %15 : vector<16x32xf32>
    %17 = vector.broadcast %3 : vector<1x32xf32> to vector<16x32xf32>
    %18 = arith.mulf %16, %17 : vector<16x32xf32>
    %cst_10 = arith.constant dense<0.000000e+00> : vector<16xf32>
    %19 = vector.multi_reduction <add>, %18, %cst_10 [1] : vector<16x32xf32> to vector<16xf32>
    %20 = vector.shape_cast %19 : vector<16xf32> to vector<16x1xf32>
    %c0_11 = arith.constant 0 : index
    %21 = memref.load %arg4[%c0_11] : memref<1xf32, #tpu.memory_space<smem>>
    %22 = vector.broadcast %21 : f32 to vector<16x1xf32>
    %23 = arith.addf %20, %22 : vector<16x1xf32>
    %cst_12 = arith.constant 1.000000e+00 : f32
    %cst_13 = arith.constant 8.000000e+00 : f32
    %24 = arith.divf %cst_12, %cst_13 : f32
    %25 = vector.extract_strided_slice %23 {offsets = [0, 0], sizes = [8, 1], strides = [1, 1]} : vector<16x1xf32> to vector<8x1xf32>
    %26 = vector.extract_strided_slice %23 {offsets = [8, 0], sizes = [8, 1], strides = [1, 1]} : vector<16x1xf32> to vector<8x1xf32>
    %27 = vector.shape_cast %25 : vector<8x1xf32> to vector<1x8x1xf32>
    %cst_14 = arith.constant dense<0.000000e+00> : vector<1xf32>
    %28 = vector.multi_reduction <add>, %27, %cst_14 [1, 2] : vector<1x8x1xf32> to vector<1xf32>
    %29 = vector.shape_cast %28 : vector<1xf32> to vector<1x1x1xf32>
    %30 = vector.extract %29[0, 0, 0] : f32 from vector<1x1x1xf32>
    %31 = arith.mulf %30, %24 : f32
    %c0_15 = arith.constant 0 : index
    %32 = memref.load %arg5[%c0_15] : memref<3xf32, #tpu.memory_space<smem>>
    memref.store %31, %arg5[%c0_15] : memref<3xf32, #tpu.memory_space<smem>>
    %33 = vector.shape_cast %26 : vector<8x1xf32> to vector<1x8x1xf32>
    %cst_16 = arith.constant dense<0xFF800000> : vector<1xf32>
    %34 = vector.multi_reduction <maximumf>, %33, %cst_16 [1, 2] : vector<1x8x1xf32> to vector<1xf32>
    %35 = vector.shape_cast %34 : vector<1xf32> to vector<1x1x1xf32>
    %36 = vector.extract %35[0, 0, 0] : f32 from vector<1x1x1xf32>
    %37 = vector.broadcast %36 : f32 to vector<8x1xf32>
    %38 = arith.subf %26, %37 : vector<8x1xf32>
    %39 = math.exp %38 : vector<8x1xf32>
    %40 = vector.shape_cast %39 : vector<8x1xf32> to vector<1x8x1xf32>
    %cst_17 = arith.constant dense<0.000000e+00> : vector<1xf32>
    %41 = vector.multi_reduction <add>, %40, %cst_17 [1, 2] : vector<1x8x1xf32> to vector<1xf32>
    %42 = vector.shape_cast %41 : vector<1xf32> to vector<1x1x1xf32>
    %43 = vector.extract %42[0, 0, 0] : f32 from vector<1x1x1xf32>
    %44 = arith.mulf %43, %24 : f32
    %45 = math.log %44 : f32
    %46 = arith.addf %36, %45 : f32
    %c1 = arith.constant 1 : index
    %47 = memref.load %arg5[%c1] : memref<3xf32, #tpu.memory_space<smem>>
    memref.store %46, %arg5[%c1] : memref<3xf32, #tpu.memory_space<smem>>
    %48 = math.exp %46 : f32
    %c2 = arith.constant 2 : index
    %49 = memref.load %arg5[%c2] : memref<3xf32, #tpu.memory_space<smem>>
    memref.store %48, %arg5[%c2] : memref<3xf32, #tpu.memory_space<smem>>
    return
  }
}

</mosaic_0001>

<llo_original>
// kernel: tpu_custom_call.1
$region0: #{tpu_custom_call.1}
  #allocation0 [shape = 'u32[]', space=smem, size = 0x4, offset = 0x4, fixed_abs, tag = 'smem constant byte address 0x4 - core index']
  #allocation1 [shape = 'u32[72,128]{1,0:T(1,128)}', space=vmem, size = 0x9000, scoped, tag = 'internal scratch']
  #allocation2 [shape = 'f32[1]{0:T(128)S(6)}', space=smem, size = 0x200, scoped, tag = 'scoped memory for tpu_custom_call.1']
  %s0 = inlined_call_operand.vmem [shape: f32[16,8], index: 0, kind: input, shape index: {}]
  %s1 = inlined_call_operand.vmem [shape: f32[8,32], index: 1, kind: input, shape index: {}]
  %s2 = inlined_call_operand.hbm [shape: f32[32,32], index: 2, kind: input, shape index: {}]
  %s3 = inlined_call_operand.vmem [shape: f32[3,32], index: 3, kind: input, shape index: {}]
  %s4 = inlined_call_operand.<no memory space> [shape: f32[1], index: 4, kind: input, shape index: {}]
  %s5 = inlined_call_operand.hbm [shape: f32[3], index: 5, kind: output, shape index: {}]
  %s6 = sld [smem:[#allocation0]]
  $region34: #{tpu_custom_call.1} parent=0
    _
  %s8 = ssub.s32 1, %s6
  %s9 = scalar_select 0, %s8, %s6
  %10 = sst [smem:[#allocation2]] %s4
  $region1: #{tpu_custom_call.1} parent=0
    #allocation3 [shape = 'u8[16384]{0}', space=vmem, size = 0x4000, scoped, tag = 'input window, operand 2, single buffered']
    #allocation4 [shape = 's32[1]{0}', space=sflag, size = 0x4, scoped, tag = 'scoped memory for tpu_custom_call.1']
    #allocation5 [shape = 's32[1]{0}', space=sflag, size = 0x4, scoped, tag = 'scoped memory for tpu_custom_call.1']
    #allocation6 [shape = 'u8[512]{0}', space=smem, size = 0x200, scoped, tag = 'output window, operand 0, single buffered']
    %11 = vsyncpa [#allocation4], 0
    %12 = vsyncpa [#allocation5], 0
    // Predicated region
    $region2: #{tpu_custom_call.1} parent=1 // pred_check
      _
    $region3: #{tpu_custom_call.1} parent=1 // pred_check_branch
      %14 = sbr.rel (0) target = $region5
    $region4: #{tpu_custom_call.1} parent=1 // pred_region
      _
    $region5: #{tpu_custom_call.1} parent=1 // pred_fallthru
      _
    // Predicated region
    $region6: #{tpu_custom_call.1} parent=1 // pred_check
      _
    $region7: #{tpu_custom_call.1} parent=1 // pred_check_branch
      %16 = sbr.rel (0) target = $region9
    $region8: #{tpu_custom_call.1} parent=1 // pred_region
      _
    $region9: #{tpu_custom_call.1} parent=1 // pred_fallthru
      _
    // Predicated region
    $region10: #{tpu_custom_call.1} parent=1 // pred_check
      _
    $region11: #{tpu_custom_call.1} parent=1 // pred_check_branch
      %18 = sbr.rel (0) target = $region13
    $region12: #{tpu_custom_call.1} parent=1 // pred_region
      %20 = vsyncadd [#allocation4], 0
      %s21 = sshll.u32 %s2, 4
      %s22 = int_to_ptr.hbm [resolvable:$true] %s21
      %s23 = sshll.u32 [#allocation3], 4
      %s24 = int_to_ptr.vmem [resolvable:$true] %s23
      %29 = dma.hbm_to_vmem [thread:$0]  %s22, 512, %s24, [#allocation4], 128, 128, 8
    $region13: #{tpu_custom_call.1} parent=1 // pred_fallthru
      _
    // Predicated region
    $region14: #{tpu_custom_call.1} parent=1 // pred_check
      _
    $region15: #{tpu_custom_call.1} parent=1 // pred_check_branch
      %31 = sbr.rel (0) target = $region17
    $region16: #{tpu_custom_call.1} parent=1 // pred_region
      _
    $region17: #{tpu_custom_call.1} parent=1 // pred_fallthru
      _
    // Predicated region
    $region18: #{tpu_custom_call.1} parent=1 // pred_check
      _
    $region19: #{tpu_custom_call.1} parent=1 // pred_check_branch
      %33 = sbr.rel (0) target = $region21
    $region20: #{tpu_custom_call.1} parent=1 // pred_region
      _
    $region21: #{tpu_custom_call.1} parent=1 // pred_fallthru
      _
    // Predicated region
    $region22: #{tpu_custom_call.1} parent=1 // pred_check
      _
    $region23: #{tpu_custom_call.1} parent=1 // pred_check_branch
      %35 = sbr.rel (0) target = $region25
    $region24: #{tpu_custom_call.1} parent=1 // pred_region
      %37 = dma.done [#allocation4], 512
    $region25: #{tpu_custom_call.1} parent=1 // pred_fallthru
      _
    %v38 = vld [vmem:[%s3] sm:$0x7]
    %v39 = vld [vmem:[%s0] sm:$0xff]
    %v40 = vld [vmem:[%s0 + $0x8] sm:$0xff]
    %v41 = vld [vmem:[%s1] sm:$0xff]
    %v42 = vperm.slane %v38, 0
    %vm43 = vcmask 64512
    %v45 = vsel %vm43, %v39, 0
    %v48 = vsel %vm43, %v40, 0
    %50 = vmatpush.msra.mxu0 0.0
    %51 = vmatpush.msra.mxu0 0.0
    %52 = vmatpush.msra.mxu0 0.0
    %53 = vmatpush.msra.mxu0 0.0
    %54 = vmatpush.msra.mxu0 0.0
    %55 = vmatpush.msra.mxu0 0.0
    %56 = vmatpush.msra.mxu0 0.0
    %57 = vmatpush.msra.mxu0 0.0
    %58 = vmatpush.msra.mxu0 0.0
    %59 = vmatpush.msra.mxu0 0.0
    %60 = vmatpush.msra.mxu0 0.0
    %61 = vmatpush.msra.mxu0 0.0
    %62 = vmatpush.msra.mxu0 0.0
    %63 = vmatpush.msra.mxu0 0.0
    %64 = vmatpush.msra.mxu0 0.0
    %65 = vmatpush.msra.mxu0 %v41
    %66 = vmatmul.f32.gmra.mxu0 %v45
    %v67 = vpop.f32.mrf.mxu0
    %v68 = vadd.f32 %v42, %v67
    %69 = vmatmul.f32.gmra.mxu0 %v48
    %v70 = vpop.f32.mrf.mxu0
    %v71 = vadd.f32 %v42, %v70
    %72 = vdwg.mxu0
    %v73 = vmax.f32 %v68, 0.0
    %v74 = vmax.f32 %v71, 0.0
    %v75 = vld [vmem:[#allocation3] sm:$0xff]
    %v76 = vld [vmem:[#allocation3 + $0x8] sm:$0xff]
    %v77 = vld [vmem:[#allocation3 + $0x10] sm:$0xff]
    %v78 = vld [vmem:[#allocation3 + $0x18] sm:$0xff]
    %v79 = vperm.slane %v38, 1
    %vm80 = vcmask 261120
    %v82 = vsel %vm80, %v73, 0
    %v85 = vsel %vm80, %v74, 0
    %87 = vmatpush.msra.mxu0 0.0
    %88 = vmatpush.msra.mxu0 0.0
    %89 = vmatpush.msra.mxu0 0.0
    %90 = vmatpush.msra.mxu0 0.0
    %91 = vmatpush.msra.mxu0 0.0
    %92 = vmatpush.msra.mxu0 0.0
    %93 = vmatpush.msra.mxu0 0.0
    %94 = vmatpush.msra.mxu0 0.0
    %95 = vmatpush.msra.mxu0 0.0
    %96 = vmatpush.msra.mxu0 0.0
    %97 = vmatpush.msra.mxu0 0.0
    %98 = vmatpush.msra.mxu0 0.0
    %99 = vmatpush.msra.mxu0 %v78
    %100 = vmatpush.msra.mxu0 %v77
    %101 = vmatpush.msra.mxu0 %v76
    %102 = vmatpush.msra.mxu0 %v75
    %103 = vmatmul.f32.gmra.mxu0 %v82
    %v104 = vpop.f32.mrf.mxu0
    %v105 = vadd.f32 %v79, %v104
    %106 = vmatmul.f32.gmra.mxu0 %v85
    %v107 = vpop.f32.mrf.mxu0
    %v108 = vadd.f32 %v79, %v107
    %109 = vdwg.mxu0
    %v110 = vmax.f32 %v105, 0.0
    %v111 = vmax.f32 %v108, 0.0
    %v112 = vperm.slane %v38, 2
    %v113 = vmul.f32 %v110, %v112
    %v114 = vmul.f32 %v111, %v112
    %v115 = vsel %vm80, %v113, 0.0
    %116 = vadd.xlane.f32.xlu0 %v115
    %v117 = vpop.xlane.xlu0 %116
    %v118 = vsel %vm80, %v114, 0.0
    %119 = vadd.xlane.f32.xlu0 %v118
    %v120 = vpop.xlane.xlu0 %119
    %s121 = sld [smem:[#allocation2]]
    %v122 = vstv %s121
    %v123 = vadd.f32 %v117, %v122
    %v124 = vadd.f32 %v120, %v122
    %vm125 = vcmask 7168
    %v126 = vsel %vm125, %v123, 0.0
    %127 = vadd.xlane.f32.xlu0 %v126
    %v128 = vpop.xlane.xlu0 %127
    %v129 = vrot.slane %v128, 4
    %v130 = vadd.f32 %v128, %v129
    %v131 = vrot.slane %v130, 2
    %v132 = vadd.f32 %v130, %v131
    %v133 = vrot.slane %v132, 1
    %v134 = vadd.f32 %v132, %v133
    %s135 = vtos %v134
    %s136 = smul.f32 %s135, 0.125
    %s137 = scalar_lea.smem [#allocation6], 0
    %138 = sst [smem:[%s137]] %s136
    %v139 = vrot.slane %v124, 4
    %v140 = vmax.f32 %v124, %v139
    %v141 = vrot.slane %v140, 2
    %v142 = vmax.f32 %v140, %v141
    %v143 = vrot.slane %v142, 1
    %v144 = vmax.f32 %v142, %v143
    %s145 = vtos %v144
    %v146 = vstv %s145
    %v147 = vsub.f32 %v124, %v146
    %v148 = vmul.f32 %v147, 1.442695
    %v149 = vpow.pop %v148
    %v150 = vsel %vm125, %v149, 0.0
    %151 = vadd.xlane.f32.xlu0 %v150
    %v152 = vpop.xlane.xlu0 %151
    %v153 = vrot.slane %v152, 4
    %v154 = vadd.f32 %v152, %v153
    %v155 = vrot.slane %v154, 2
    %v156 = vadd.f32 %v154, %v155
    %v157 = vrot.slane %v156, 1
    %v158 = vadd.f32 %v156, %v157
    %s159 = vtos %v158
    %s160 = smul.f32 %s159, 0.125
    %v161 = vstv %s160
    %v162 = vlog2.pop %v161
    %v163 = vmul.f32 %v162, 0.6931472
    %s164 = vtos %v163
    %s165 = sadd.f32 %s145, %s164
    %s166 = scalar_lea.smem [#allocation6], 1
    %167 = sst [smem:[%s166]] %s165
    %v168 = vstv %s165
    %v169 = vmul.f32 %v168, 1.442695
    %v170 = vpow.pop %v169
    %s171 = vtos %v170
    %s172 = scalar_lea.smem [#allocation6], 2
    %173 = sst [smem:[%s172]] %s171
    // Predicated region
    $region26: #{tpu_custom_call.1} parent=1 // pred_check
      _
    $region27: #{tpu_custom_call.1} parent=1 // pred_check_branch
      %175 = sbr.rel (0) target = $region29
    $region28: #{tpu_custom_call.1} parent=1 // pred_region
      %177 = vsyncadd [#allocation5], 0
      %s179 = sshll.u32 %s5, 4
      %s180 = int_to_ptr.hbm [resolvable:$true] %s179
      %182 = dma.smem_to_hbm [#allocation6], 16, %s180, [#allocation5]
    $region29: #{tpu_custom_call.1} parent=1 // pred_fallthru
      _
    // Predicated region
    $region30: #{tpu_custom_call.1} parent=1 // pred_check
      _
    $region31: #{tpu_custom_call.1} parent=1 // pred_check_branch
      %184 = sbr.rel (0) target = $region33
    $region32: #{tpu_custom_call.1} parent=1 // pred_region
      %186 = dma.done [#allocation5], 16
    $region33: #{tpu_custom_call.1} parent=1 // pred_fallthru
      _
    %187 = sfence
    %188 = vsyncpa [#allocation4], 1
    %189 = vsyncpa [#allocation5], 1

</llo_original>
